<compile_context>
chip_gen: v7x
topology: tpu7x:2x2x1
jax: 0.10.0
libtpu: 0.0.40
codegen_flags: <defaults>
</compile_context>

<pallas_src>
import math

import jax
import jax.numpy as jnp
from jax.experimental import pallas as pl
from jax.experimental.pallas import tpu as pltpu

_LANES = 128  # vreg lane width: keep the last block dim exactly lane-dense


def daf_kernel(x_ref, r_ref, o_ref):
    """Elementwise add on one (block_rows, 128) tile."""
    o_ref[...] = x_ref[...] + r_ref[...]


def daf_forward(x, residual, *, max_block_rows=2048):
    """DAF: return x + residual, computed with a tiled Pallas kernel.

    Works for any shape/dtype as long as x and residual match; the tensors are
    flattened to a lane-dense (rows, 128) view (padded if needed) and tiled
    along rows for pipelining.
    """
    assert x.shape == residual.shape, "DAF requires matching shapes"
    assert x.dtype == residual.dtype, "DAF requires matching dtypes"
    orig_shape = x.shape
    total = math.prod(orig_shape)

    rows = -(-total // _LANES)                        # ceil(total / 128)
    # block rows: multiple of 8 (sublane constraint), capped at max_block_rows
    block_rows = min(max_block_rows, -(-rows // 8) * 8)
    padded_rows = -(-rows // block_rows) * block_rows
    padded_total = padded_rows * _LANES

    xf = jnp.ravel(x)
    rf = jnp.ravel(residual)
    if padded_total != total:
        pad = padded_total - total
        xf = jnp.pad(xf, (0, pad))
        rf = jnp.pad(rf, (0, pad))
    x2 = xf.reshape(padded_rows, _LANES)
    r2 = rf.reshape(padded_rows, _LANES)

    grid = (padded_rows // block_rows,)
    spec = pl.BlockSpec((block_rows, _LANES), lambda i: (i, 0))

    out = pl.pallas_call(
        daf_kernel,
        out_shape=jax.ShapeDtypeStruct((padded_rows, _LANES), x.dtype),
        grid=grid,
        in_specs=[spec, spec],
        out_specs=spec,
        compiler_params=pltpu.CompilerParams(
            dimension_semantics=("parallel",)),
    )(x2, r2)

    out = out.reshape(-1)
    if padded_total != total:
        out = out[:total]
    return out.reshape(orig_shape)


if __name__ == "__main__":
    key = jax.random.PRNGKey(0)
    k_x, k_r = jax.random.split(key)

    N, C, H, W = 2, 4, 16, 16
    x = jax.random.normal(k_x, (N, C, H, W), jnp.float32)
    residual = jax.random.normal(k_r, (N, C, H, W), jnp.float32)

    out = daf_forward(x, residual)
    out = jax.block_until_ready(out)

    ref = x + residual
    assert out.shape == x.shape
    assert out.dtype == x.dtype
    assert jnp.max(jnp.abs(out - ref)) < 1e-6

    print("KERNEL_OK")
</pallas_src>

<mosaic_0001>
module attributes {stable_mosaic.version = 11 : i64} {
  func.func @daf_kernel(%arg0: i32, %arg1: memref<16x128xf32, #tpu.memory_space<vmem>>, %arg2: memref<16x128xf32, #tpu.memory_space<vmem>>, %arg3: memref<16x128xf32, #tpu.memory_space<vmem>>) attributes {dimension_semantics = [#tpu.dimension_semantics<parallel>], iteration_bounds = array<i64: 1>, scalar_prefetch = 0 : i64, scratch_operands = 0 : i64, tpu.core_type = #tpu.core_type<tc>, window_params = [{transform_indices = @transform_0, window_bounds = array<i64: 16, 128>}, {transform_indices = @transform_1, window_bounds = array<i64: 16, 128>}, {transform_indices = @transform_2, window_bounds = array<i64: 16, 128>}]} {
    %c0 = arith.constant 0 : index
    %c0_0 = arith.constant 0 : index
    %0 = vector.load %arg1[%c0, %c0_0] : memref<16x128xf32, #tpu.memory_space<vmem>>, vector<16x128xf32>
    %c0_1 = arith.constant 0 : index
    %c0_2 = arith.constant 0 : index
    %1 = vector.load %arg2[%c0_1, %c0_2] : memref<16x128xf32, #tpu.memory_space<vmem>>, vector<16x128xf32>
    %2 = arith.addf %0, %1 : vector<16x128xf32>
    %c0_3 = arith.constant 0 : index
    %c0_4 = arith.constant 0 : index
    %3 = vector.load %arg3[%c0_3, %c0_4] : memref<16x128xf32, #tpu.memory_space<vmem>>, vector<16x128xf32>
    tpu.vector_store %arg3[%c0_3, %c0_4], %2 {strides = array<i32>} : memref<16x128xf32, #tpu.memory_space<vmem>>, vector<16x128xf32>,
    return
  }
  func.func @transform_0(%arg0: i32) -> (i32, i32) {
    %c0_i32 = arith.constant 0 : i32
    %c0_i32_0 = arith.constant 0 : i32
    return %arg0, %c0_i32 : i32, i32
  }
  func.func @transform_1(%arg0: i32) -> (i32, i32) {
    %c0_i32 = arith.constant 0 : i32
    %c0_i32_0 = arith.constant 0 : i32
    return %arg0, %c0_i32 : i32, i32
  }
  func.func @transform_2(%arg0: i32) -> (i32, i32) {
    %c0_i32 = arith.constant 0 : i32
    %c0_i32_0 = arith.constant 0 : i32
    return %arg0, %c0_i32 : i32, i32
  }
}

</mosaic_0001>

<llo_original>
// kernel: tpu_custom_call.1
$region0: #{tpu_custom_call.1}
  #allocation0 [shape = 'u32[]', space=smem, size = 0x4, offset = 0x4, fixed_abs, tag = 'smem constant byte address 0x4 - core index']
  #allocation1 [shape = 'u32[144,128]{1,0:T(1,128)}', space=vmem, size = 0x12000, scoped, tag = 'internal scratch']
  %s0 = inlined_call_operand.hbm [shape: f32[16,128], index: 0, kind: input, shape index: {}]
  %s1 = inlined_call_operand.hbm [shape: f32[16,128], index: 1, kind: input, shape index: {}]
  %s2 = inlined_call_operand.hbm [shape: f32[16,128], index: 2, kind: output, shape index: {}]
  %s3 = sld [smem:[#allocation0]]
  $region26: #{tpu_custom_call.1} parent=0
    _
  %s5 = ssub.s32 1, %s3
  %s6 = scalar_select 0, %s5, %s3
  $region1: #{tpu_custom_call.1} parent=0
    #allocation2 [shape = 'u8[8192]{0}', space=vmem, size = 0x2000, scoped, tag = 'input window, operand 0, single buffered']
    #allocation3 [shape = 's32[1]{0}', space=sflag, size = 0x4, scoped, tag = 'scoped memory for tpu_custom_call.1']
    #allocation4 [shape = 's32[1]{0}', space=sflag, size = 0x4, scoped, tag = 'scoped memory for tpu_custom_call.1']
    #allocation5 [shape = 'u8[8192]{0}', space=vmem, size = 0x2000, scoped, tag = 'input window, operand 1, single buffered']
    #allocation6 [shape = 's32[1]{0}', space=sflag, size = 0x4, scoped, tag = 'scoped memory for tpu_custom_call.1']
    #allocation7 [shape = 'u8[8192]{0}', space=vmem, size = 0x2000, scoped, tag = 'output window, operand 0, single buffered']
    %7 = vsyncpa [#allocation3], 0
    %8 = vsyncpa [#allocation6], 0
    %9 = vsyncpa [#allocation4], 0
    // Predicated region
    $region2: #{tpu_custom_call.1} parent=1 // pred_check
      _
    $region3: #{tpu_custom_call.1} parent=1 // pred_check_branch
      %11 = sbr.rel (0) target = $region5
    $region4: #{tpu_custom_call.1} parent=1 // pred_region
      %s13 = ssub.s32 256, 256
      %14 = vsyncadd [#allocation3], %s13
      %s15 = sshll.u32 [#allocation2], 4
      %s16 = int_to_ptr.vmem [resolvable:$true] %s15
      %21 = dma.hbm_to_vmem [thread:$0]  %s0, 256, %s16, [#allocation3], 128, 128, 8
    $region5: #{tpu_custom_call.1} parent=1 // pred_fallthru
      _
    // Predicated region
    $region6: #{tpu_custom_call.1} parent=1 // pred_check
      _
    $region7: #{tpu_custom_call.1} parent=1 // pred_check_branch
      %23 = sbr.rel (0) target = $region9
    $region8: #{tpu_custom_call.1} parent=1 // pred_region
      %s25 = ssub.s32 256, 256
      %26 = vsyncadd [#allocation6], %s25
      %s27 = sshll.u32 [#allocation5], 4
      %s28 = int_to_ptr.vmem [resolvable:$true] %s27
      %33 = dma.hbm_to_vmem [thread:$0]  %s1, 256, %s28, [#allocation6], 128, 128, 8
    $region9: #{tpu_custom_call.1} parent=1 // pred_fallthru
      _
    // Predicated region
    $region10: #{tpu_custom_call.1} parent=1 // pred_check
      _
    $region11: #{tpu_custom_call.1} parent=1 // pred_check_branch
      %35 = sbr.rel (0) target = $region13
    $region12: #{tpu_custom_call.1} parent=1 // pred_region
      %36 = dma.done [#allocation3], 256
    $region13: #{tpu_custom_call.1} parent=1 // pred_fallthru
      _
    // Predicated region
    $region14: #{tpu_custom_call.1} parent=1 // pred_check
      _
    $region15: #{tpu_custom_call.1} parent=1 // pred_check_branch
      %38 = sbr.rel (0) target = $region17
    $region16: #{tpu_custom_call.1} parent=1 // pred_region
      %39 = dma.done [#allocation6], 256
    $region17: #{tpu_custom_call.1} parent=1 // pred_fallthru
      _
    %v40 = vld [vmem:[#allocation2] sm:$0xff]
    %v41 = vld [vmem:[#allocation2 + $0x8] sm:$0xff]
    %v42 = vld [vmem:[#allocation5] sm:$0xff]
    %v43 = vld [vmem:[#allocation5 + $0x8] sm:$0xff]
    %v44 = vadd.f32 %v40, %v42
    %v45 = vadd.f32 %v41, %v43
    %46 = vst [vmem:[#allocation7] sm:$0xff] %v44
    %47 = vst [vmem:[#allocation7 + $0x8] sm:$0xff] %v45
    // Predicated region
    $region18: #{tpu_custom_call.1} parent=1 // pred_check
      _
    $region19: #{tpu_custom_call.1} parent=1 // pred_check_branch
      %49 = sbr.rel (0) target = $region21
    $region20: #{tpu_custom_call.1} parent=1 // pred_region
      %s51 = ssub.s32 256, 256
      %52 = vsyncadd [#allocation4], %s51
      %s53 = sshll.u32 [#allocation7], 4
      %s54 = int_to_ptr.vmem [resolvable:$true] %s53
      %59 = dma.vmem_to_hbm [thread:$0]  %s54, 256, %s2, [#allocation4], 128, 128, 8
    $region21: #{tpu_custom_call.1} parent=1 // pred_fallthru
      _
    // Predicated region
    $region22: #{tpu_custom_call.1} parent=1 // pred_check
      _
    $region23: #{tpu_custom_call.1} parent=1 // pred_check_branch
      %61 = sbr.rel (0) target = $region25
    $region24: #{tpu_custom_call.1} parent=1 // pred_region
      %62 = dma.done [#allocation4], 256
    $region25: #{tpu_custom_call.1} parent=1 // pred_fallthru
      _
    %63 = vsyncpa [#allocation3], 1
    %64 = vsyncpa [#allocation6], 1
    %65 = vsyncpa [#allocation4], 1

</llo_original>
